<compile_context>
chip_gen: v7x
topology: tpu7x:2x2x1
jax: 0.10.0
libtpu: 0.0.40
codegen_flags: <defaults>
</compile_context>

<pallas_src>
import functools

import jax
import jax.numpy as jnp
from jax.experimental import pallas as pl
from jax.experimental.pallas import tpu as pltpu


def _round_up(x, m):
    return ((x + m - 1) // m) * m


def policy_net_kernel(x_ref, w1_ref, b1_ref, wh_ref, bh_ref, out_ref, *, action_dim):
    """One batch tile.

    x_ref   : [TB, state_dim]            native batch-major tile of x
    w1_ref  : [hidden_dim, state_dim]    fc1 weight (torch [out, in] layout)
    b1_ref  : [hidden_dim, 1]
    wh_ref  : [2*action_dim, hidden_dim] fused fc_mu ++ fc_std weights
    bh_ref  : [2*action_dim, 1]
    out_ref : [2*action_dim, TB]         rows [0:A) = mu, rows [A:2A) = std
    """
    # In-kernel transpose (XLU) -> batch on lanes for the matmuls / stores.
    xq = x_ref[...].astype(w1_ref.dtype)           # [TB, state_dim]
    h = jnp.dot(w1_ref[...], xq.T,                  # [hidden, TB], f32 accumulate
                preferred_element_type=jnp.float32)
    h = jnp.maximum(h + b1_ref[...], 0.0)

    # Fused mu/std heads: one matmul to [2A, TB] instead of two tiny ones.
    z = jnp.dot(wh_ref[...], h.astype(wh_ref.dtype),
                preferred_element_type=jnp.float32)
    z = z + bh_ref[...]

    # Sublane-row mask selects which activation applies to which head.
    rows = jax.lax.broadcasted_iota(jnp.int32, z.shape, 0)
    mu = 2.0 * jnp.tanh(z)
    # Branchless, overflow-safe softplus: max(z, 0) + log1p(exp(-|z|)).
    sp = jnp.maximum(z, 0.0) + jnp.log1p(jnp.exp(-jnp.abs(z)))
    out_ref[...] = jnp.where(rows < action_dim, mu, sp).astype(out_ref.dtype)


def _xla_forward(x, w1, b1, w_mu, b_mu, w_std, b_std):
    """Plain-XLA fallback for tiny batches (kernel launch would dominate)."""
    h = jnp.maximum(jnp.dot(x, w1.T) + b1, 0.0)
    mu = 2.0 * jnp.tanh(jnp.dot(h, w_mu.T) + b_mu)
    std = jax.nn.softplus(jnp.dot(h, w_std.T) + b_std)
    return mu, std


def policy_net_continue(x, w1, b1, w_mu, b_mu, w_std, b_std,
                        *, block_b=8192, use_bf16_matmul=False,
                        min_pallas_batch=512, force_pallas=False,
                        return_fused=False):
    """PPO continuous-action policy head.

    x     : [B, state_dim] float32 (or bfloat16)
    w1    : [hidden_dim, state_dim]   (torch nn.Linear layout [out, in])
    b1    : [hidden_dim]
    w_mu  : [action_dim, hidden_dim];  b_mu  : [action_dim]
    w_std : [action_dim, hidden_dim];  b_std : [action_dim]
    Returns (mu [B, action_dim], std [B, action_dim]) float32,
    or the fused [2*action_dim, B] slab if return_fused=True.
    """
    B, state_dim = x.shape
    hidden_dim = w1.shape[0]
    action_dim = w_mu.shape[0]
    a2 = 2 * action_dim

    if not force_pallas and B < min_pallas_batch:
        mu, std = _xla_forward(x.astype(jnp.float32), w1, b1, w_mu, b_mu, w_std, b_std)
        if return_fused:
            return jnp.concatenate([mu, std], axis=1).T
        return mu, std

    # Fuse the two head projections into one [2A, hidden] weight / [2A, 1] bias.
    wh = jnp.concatenate([w_mu, w_std], axis=0)
    bh = jnp.concatenate([b_mu, b_std], axis=0).reshape(a2, 1).astype(jnp.float32)
    b1c = b1.reshape(hidden_dim, 1).astype(jnp.float32)

    wdtype = jnp.bfloat16 if use_bf16_matmul else jnp.float32
    w1c = w1.astype(wdtype)
    whc = wh.astype(wdtype)
    # bf16 streaming of x halves the dominant HBM stream (no-op if x is already
    # bf16 from the producing layer, which is the ideal way to use this path).
    x_in = x.astype(jnp.bfloat16) if use_bf16_matmul else x

    # Batch tile: large (default 8192) so the grid is roofline-bound, not
    # per-step-overhead bound; always a multiple of 128 lanes.
    blk = max(128, min(_round_up(int(block_b), 128), _round_up(B, 128)))
    grid = (pl.cdiv(B, blk),)

    grid_spec = pltpu.PrefetchScalarGridSpec(
        num_scalar_prefetch=0,
        grid=grid,
        in_specs=[
            pl.BlockSpec((blk, state_dim), lambda i: (i, 0)),          # streamed x tile
            # Weights/biases are VMEM-resident (constant index_map). For very
            # large hidden dims on v7x, single-buffer them (pipeline_mode=
            # pl.Buffered(1)) to halve their footprint; irrelevant here.
            pl.BlockSpec((hidden_dim, state_dim), lambda i: (0, 0)),
            pl.BlockSpec((hidden_dim, 1), lambda i: (0, 0)),
            pl.BlockSpec((a2, hidden_dim), lambda i: (0, 0)),
            pl.BlockSpec((a2, 1), lambda i: (0, 0)),
        ],
        out_specs=pl.BlockSpec((a2, blk), lambda i: (0, i)),
    )

    # VMEM budget: double-buffered streamed tiles + resident weights + temps.
    x_item = jnp.dtype(x_in.dtype).itemsize
    w_item = jnp.dtype(wdtype).itemsize
    stream_bytes = 2 * (x_item * blk * state_dim + 4 * blk * a2)
    weight_bytes = 2 * (w_item * (hidden_dim * state_dim + a2 * hidden_dim)
                        + 4 * (hidden_dim + a2))
    work_bytes = 4 * blk * (state_dim + hidden_dim + 3 * a2)
    vmem_limit = int(min(48 * 1024 * 1024,                 # headroom on v7x (64 MiB/TC)
                         max(16 * 1024 * 1024,
                             2 * (stream_bytes + weight_bytes + work_bytes))))

    cost = pl.CostEstimate(
        flops=2 * B * (state_dim * hidden_dim + hidden_dim * a2),
        transcendentals=3 * B * a2,   # tanh + exp + log1p per fused output element
        bytes_accessed=x_item * B * state_dim + 4 * B * a2
        + w_item * (hidden_dim * state_dim + a2 * hidden_dim)
        + 4 * (hidden_dim + a2),
    )

    fused = pl.pallas_call(
        functools.partial(policy_net_kernel, action_dim=action_dim),
        out_shape=jax.ShapeDtypeStruct((a2, B), jnp.float32),
        grid_spec=grid_spec,
        compiler_params=pltpu.CompilerParams(
            dimension_semantics=("parallel",),
            vmem_limit_bytes=vmem_limit,
        ),
        cost_estimate=cost,
    )(x_in, w1c, b1c, whc, bh)

    if return_fused:
        return fused                      # [2A, B], rows [0:A)=mu, [A:2A)=std

    # Single output transpose (instead of two) to recover torch layout.
    out_t = fused.T                       # [B, 2A]
    return out_t[:, :action_dim], out_t[:, action_dim:]


def _init_linear(key, in_dim, out_dim):
    # Deterministic init mirroring torch.nn.Linear's U(-1/sqrt(in), 1/sqrt(in)).
    kw, kb = jax.random.split(key)
    bound = 1.0 / jnp.sqrt(jnp.float32(in_dim))
    w = jax.random.uniform(kw, (out_dim, in_dim), jnp.float32, -bound, bound)
    b = jax.random.uniform(kb, (out_dim,), jnp.float32, -bound, bound)
    return w, b


if __name__ == "__main__":
    state_dim, hidden_dim, action_dim = 16, 32, 4
    batch = 2

    key = jax.random.PRNGKey(0)
    kx, kxb, k1, k2, k3 = jax.random.split(key, 5)

    x = jax.random.normal(kx, (batch, state_dim), jnp.float32)
    w1, b1 = _init_linear(k1, state_dim, hidden_dim)
    w_mu, b_mu = _init_linear(k2, hidden_dim, action_dim)
    w_std, b_std = _init_linear(k3, hidden_dim, action_dim)

    def reference(xi):
        h = jnp.maximum(jnp.dot(xi, w1.T, precision="highest") + b1, 0.0)
        mu_r = 2.0 * jnp.tanh(jnp.dot(h, w_mu.T, precision="highest") + b_mu)
        std_r = jax.nn.softplus(jnp.dot(h, w_std.T, precision="highest") + b_std)
        return mu_r, std_r

    # 1) Pallas path at the small demo batch (forced past the tiny-batch fallback).
    mu, std = policy_net_continue(x, w1, b1, w_mu, b_mu, w_std, b_std,
                                  force_pallas=True)
    jax.block_until_ready((mu, std))
    mu_ref, std_ref = reference(x)
    assert mu.shape == (batch, action_dim) and std.shape == (batch, action_dim)
    assert jnp.allclose(mu, mu_ref, atol=1e-4, rtol=1e-4)
    assert jnp.allclose(std, std_ref, atol=1e-4, rtol=1e-4)

    # 2) Multi-tile grid with a ragged remainder (B=300, blk=256 -> boundary tile).
    xb = jax.random.normal(kxb, (300, state_dim), jnp.float32)
    mu_b, std_b = policy_net_continue(xb, w1, b1, w_mu, b_mu, w_std, b_std,
                                      block_b=256, force_pallas=True)
    jax.block_until_ready((mu_b, std_b))
    mu_bref, std_bref = reference(xb)
    assert jnp.allclose(mu_b, mu_bref, atol=1e-4, rtol=1e-4)
    assert jnp.allclose(std_b, std_bref, atol=1e-4, rtol=1e-4)

    # 3) bf16-streaming / bf16-MXU variant (native MXU path on v6e/v7x).
    mu_bf, std_bf = policy_net_continue(xb, w1, b1, w_mu, b_mu, w_std, b_std,
                                        block_b=256, use_bf16_matmul=True,
                                        force_pallas=True)
    jax.block_until_ready((mu_bf, std_bf))
    assert jnp.allclose(mu_bf, mu_bref, atol=5e-2, rtol=5e-2)
    assert jnp.allclose(std_bf, std_bref, atol=5e-2, rtol=5e-2)

    # 4) Default heuristic routes the tiny batch to the plain-XLA fallback.
    mu_f, std_f = policy_net_continue(x, w1, b1, w_mu, b_mu, w_std, b_std)
    jax.block_until_ready((mu_f, std_f))
    assert jnp.allclose(mu_f, mu_ref, atol=1e-4, rtol=1e-4)
    assert jnp.allclose(std_f, std_ref, atol=1e-4, rtol=1e-4)

    print("KERNEL_OK")
</pallas_src>

<mosaic_0001>
module attributes {stable_mosaic.version = 11 : i64} {
  func.func @policy_net_kernel(%arg0: i32, %arg1: memref<128x16xf32, #tpu.memory_space<vmem>>, %arg2: memref<32x16xf32, #tpu.memory_space<vmem>>, %arg3: memref<32x1xf32, #tpu.memory_space<vmem>>, %arg4: memref<8x32xf32, #tpu.memory_space<vmem>>, %arg5: memref<8x1xf32, #tpu.memory_space<vmem>>, %arg6: memref<8x128xf32, #tpu.memory_space<vmem>>) attributes {dimension_semantics = [#tpu.dimension_semantics<parallel>], iteration_bounds = array<i64: 1>, scalar_prefetch = 0 : i64, scratch_operands = 0 : i64, tpu.core_type = #tpu.core_type<tc>, window_params = [{transform_indices = @transform_0, window_bounds = array<i64: 128, 16>}, {pipeline_mode = #tpu.pipeline_mode<synchronous>, transform_indices = @transform_1, window_bounds = array<i64: 32, 16>}, {pipeline_mode = #tpu.pipeline_mode<synchronous>, transform_indices = @transform_2, window_bounds = array<i64: 32, 1>}, {pipeline_mode = #tpu.pipeline_mode<synchronous>, transform_indices = @transform_3, window_bounds = array<i64: 8, 32>}, {pipeline_mode = #tpu.pipeline_mode<synchronous>, transform_indices = @transform_4, window_bounds = array<i64: 8, 1>}, {transform_indices = @transform_5, window_bounds = array<i64: 8, 128>}]} {
    %c0 = arith.constant 0 : index
    %c0_0 = arith.constant 0 : index
    %0 = vector.load %arg1[%c0, %c0_0] : memref<128x16xf32, #tpu.memory_space<vmem>>, vector<128x16xf32>
    %c0_1 = arith.constant 0 : index
    %c0_2 = arith.constant 0 : index
    %1 = vector.load %arg2[%c0_1, %c0_2] : memref<32x16xf32, #tpu.memory_space<vmem>>, vector<32x16xf32>
    %2 = tpu.transpose %0, [1, 0] : vector<128x16xf32> -> vector<16x128xf32>
    %cst = arith.constant dense<0.000000e+00> : vector<32x128xf32>
    %3 = tpu.matmul %1, %2, %cst {dimension_numbers = #tpu.dot_dimension_numbers<[1], [0], [0], [1], [0, 0, 1, 1], [], []>} : vector<32x16xf32>, vector<16x128xf32>, vector<32x128xf32> -> vector<32x128xf32>
    %c0_3 = arith.constant 0 : index
    %c0_4 = arith.constant 0 : index
    %4 = vector.load %arg3[%c0_3, %c0_4] : memref<32x1xf32, #tpu.memory_space<vmem>>, vector<32x1xf32>
    %5 = vector.broadcast %4 : vector<32x1xf32> to vector<32x128xf32>
    %6 = arith.addf %3, %5 : vector<32x128xf32>
    %cst_5 = arith.constant 0.000000e+00 : f32
    %7 = vector.broadcast %cst_5 : f32 to vector<32x128xf32>
    %8 = arith.maximumf %6, %7 : vector<32x128xf32>
    %c0_6 = arith.constant 0 : index
    %c0_7 = arith.constant 0 : index
    %9 = vector.load %arg4[%c0_6, %c0_7] : memref<8x32xf32, #tpu.memory_space<vmem>>, vector<8x32xf32>
    %cst_8 = arith.constant dense<0.000000e+00> : vector<8x128xf32>
    %10 = tpu.matmul %9, %8, %cst_8 {dimension_numbers = #tpu.dot_dimension_numbers<[1], [0], [0], [1], [0, 0, 1, 1], [], []>} : vector<8x32xf32>, vector<32x128xf32>, vector<8x128xf32> -> vector<8x128xf32>
    %c0_9 = arith.constant 0 : index
    %c0_10 = arith.constant 0 : index
    %11 = vector.load %arg5[%c0_9, %c0_10] : memref<8x1xf32, #tpu.memory_space<vmem>>, vector<8x1xf32>
    %12 = vector.broadcast %11 : vector<8x1xf32> to vector<8x128xf32>
    %13 = arith.addf %10, %12 : vector<8x128xf32>
    %14 = tpu.iota {dimensions = array<i32: 0>} : vector<8x128xi32>
    %15 = math.tanh %13 : vector<8x128xf32>
    %cst_11 = arith.constant 2.000000e+00 : f32
    %16 = vector.broadcast %cst_11 : f32 to vector<8x128xf32>
    %17 = arith.mulf %16, %15 : vector<8x128xf32>
    %cst_12 = arith.constant 0.000000e+00 : f32
    %18 = vector.broadcast %cst_12 : f32 to vector<8x128xf32>
    %19 = arith.maximumf %13, %18 : vector<8x128xf32>
    %20 = math.absf %13 : vector<8x128xf32>
    %cst_13 = arith.constant 0.000000e+00 : f32
    %21 = vector.broadcast %cst_13 : f32 to vector<8x128xf32>
    %22 = arith.subf %21, %20 : vector<8x128xf32>
    %23 = math.exp %22 : vector<8x128xf32>
    %24 = math.log1p %23 : vector<8x128xf32>
    %25 = arith.addf %19, %24 : vector<8x128xf32>
    %c4_i32 = arith.constant 4 : i32
    %26 = vector.broadcast %c4_i32 : i32 to vector<8x128xi32>
    %27 = arith.cmpi slt, %14, %26 : vector<8x128xi32>
    %28 = arith.select %27, %17, %25 : vector<8x128xi1>, vector<8x128xf32>
    %c0_14 = arith.constant 0 : index
    %c0_15 = arith.constant 0 : index
    %29 = vector.load %arg6[%c0_14, %c0_15] : memref<8x128xf32, #tpu.memory_space<vmem>>, vector<8x128xf32>
    tpu.vector_store %arg6[%c0_14, %c0_15], %28 {strides = array<i32>} : memref<8x128xf32, #tpu.memory_space<vmem>>, vector<8x128xf32>,
    return
  }
  func.func @transform_0(%arg0: i32) -> (i32, i32) {
    %c0_i32 = arith.constant 0 : i32
    %c0_i32_0 = arith.constant 0 : i32
    return %arg0, %c0_i32 : i32, i32
  }
  func.func @transform_1(%arg0: i32) -> (i32, i32) {
    %c0_i32 = arith.constant 0 : i32
    %c0_i32_0 = arith.constant 0 : i32
    %c0_i32_1 = arith.constant 0 : i32
    return %c0_i32, %c0_i32_0 : i32, i32
  }
  func.func @transform_2(%arg0: i32) -> (i32, i32) {
    %c0_i32 = arith.constant 0 : i32
    %c0_i32_0 = arith.constant 0 : i32
    %c0_i32_1 = arith.constant 0 : i32
    return %c0_i32, %c0_i32_0 : i32, i32
  }
  func.func @transform_3(%arg0: i32) -> (i32, i32) {
    %c0_i32 = arith.constant 0 : i32
    %c0_i32_0 = arith.constant 0 : i32
    %c0_i32_1 = arith.constant 0 : i32
    return %c0_i32, %c0_i32_0 : i32, i32
  }
  func.func @transform_4(%arg0: i32) -> (i32, i32) {
    %c0_i32 = arith.constant 0 : i32
    %c0_i32_0 = arith.constant 0 : i32
    %c0_i32_1 = arith.constant 0 : i32
    return %c0_i32, %c0_i32_0 : i32, i32
  }
  func.func @transform_5(%arg0: i32) -> (i32, i32) {
    %c0_i32 = arith.constant 0 : i32
    %c0_i32_0 = arith.constant 0 : i32
    return %c0_i32, %arg0 : i32, i32
  }
}

</mosaic_0001>

<llo_original>
// kernel: tpu_custom_call.1
$region0: #{tpu_custom_call.1}
  #allocation0 [shape = 'u32[]', space=smem, size = 0x4, offset = 0x4, fixed_abs, tag = 'smem constant byte address 0x4 - core index']
  #allocation1 [shape = 'u32[144,128]{1,0:T(1,128)}', space=vmem, size = 0x12000, scoped, tag = 'internal scratch']
  %s0 = inlined_call_operand.vmem [shape: f32[2,16], index: 0, kind: input, shape index: {}]
  %s1 = inlined_call_operand.vmem [shape: f32[32,16], index: 1, kind: input, shape index: {}]
  %s2 = inlined_call_operand.vmem [shape: f32[32,1], index: 2, kind: input, shape index: {}]
  %s3 = inlined_call_operand.vmem [shape: f32[8,32], index: 3, kind: input, shape index: {}]
  %s4 = inlined_call_operand.vmem [shape: f32[8,1], index: 4, kind: input, shape index: {}]
  %s5 = inlined_call_operand.vmem [shape: f32[8,2], index: 5, kind: output, shape index: {}]
  %s6 = sld [smem:[#allocation0]]
  $region30: #{tpu_custom_call.1} parent=0
    _
  %s8 = ssub.s32 1, %s6
  %s9 = scalar_select 0, %s8, %s6
  // Predicated region
  $region2: #{tpu_custom_call.1} parent=0 // pred_check
    _
  $region3: #{tpu_custom_call.1} parent=0 // pred_check_branch
    %11 = sbr.rel (0) target = $region5
  $region4: #{tpu_custom_call.1} parent=0 // pred_region
    _
  $region5: #{tpu_custom_call.1} parent=0 // pred_fallthru
    _
  // Predicated region
  $region6: #{tpu_custom_call.1} parent=0 // pred_check
    _
  $region7: #{tpu_custom_call.1} parent=0 // pred_check_branch
    %13 = sbr.rel (0) target = $region9
  $region8: #{tpu_custom_call.1} parent=0 // pred_region
    _
  $region9: #{tpu_custom_call.1} parent=0 // pred_fallthru
    _
  // Predicated region
  $region10: #{tpu_custom_call.1} parent=0 // pred_check
    _
  $region11: #{tpu_custom_call.1} parent=0 // pred_check_branch
    %15 = sbr.rel (0) target = $region13
  $region12: #{tpu_custom_call.1} parent=0 // pred_region
    _
  $region13: #{tpu_custom_call.1} parent=0 // pred_fallthru
    _
  // Predicated region
  $region14: #{tpu_custom_call.1} parent=0 // pred_check
    _
  $region15: #{tpu_custom_call.1} parent=0 // pred_check_branch
    %17 = sbr.rel (0) target = $region17
  $region16: #{tpu_custom_call.1} parent=0 // pred_region
    _
  $region17: #{tpu_custom_call.1} parent=0 // pred_fallthru
    _
  // Predicated region
  $region18: #{tpu_custom_call.1} parent=0 // pred_check
    _
  $region19: #{tpu_custom_call.1} parent=0 // pred_check_branch
    %19 = sbr.rel (0) target = $region21
  $region20: #{tpu_custom_call.1} parent=0 // pred_region
    _
  $region21: #{tpu_custom_call.1} parent=0 // pred_fallthru
    _
  %v20 = vld [vmem:[%s0] sm:$0xff]
  %v21 = vld [vmem:[%s0 + $0x8] sm:$0xff]
  %v22 = vld [vmem:[%s0 + $0x10] sm:$0xff]
  %v23 = vld [vmem:[%s0 + $0x18] sm:$0xff]
  %v24 = vld [vmem:[%s0 + $0x20] sm:$0xff]
  %v25 = vld [vmem:[%s0 + $0x28] sm:$0xff]
  %v26 = vld [vmem:[%s0 + $0x30] sm:$0xff]
  %v27 = vld [vmem:[%s0 + $0x38] sm:$0xff]
  %v28 = vld [vmem:[%s0 + $0x40] sm:$0xff]
  %v29 = vld [vmem:[%s0 + $0x48] sm:$0xff]
  %v30 = vld [vmem:[%s0 + $0x50] sm:$0xff]
  %v31 = vld [vmem:[%s0 + $0x58] sm:$0xff]
  %v32 = vld [vmem:[%s0 + $0x60] sm:$0xff]
  %v33 = vld [vmem:[%s0 + $0x68] sm:$0xff]
  %v34 = vld [vmem:[%s0 + $0x70] sm:$0xff]
  %v35 = vld [vmem:[%s0 + $0x78] sm:$0xff]
  %v36 = vld [vmem:[%s1] sm:$0xff]
  %v37 = vld [vmem:[%s1 + $0x8] sm:$0xff]
  %v38 = vld [vmem:[%s1 + $0x10] sm:$0xff]
  %v39 = vld [vmem:[%s1 + $0x18] sm:$0xff]
  %v40 = vld [vmem:[%s2] sm:$0xff]
  %v41 = vld [vmem:[%s2 + $0x8] sm:$0xff]
  %v42 = vld [vmem:[%s2 + $0x10] sm:$0xff]
  %v43 = vld [vmem:[%s2 + $0x18] sm:$0xff]
  %45 = vset.pattern.permute.xlu0 0
  %46 = vperm.xlu0 %45, %v40
  %v47 = vpop.permute.xlu0 %46
  %50 = vset.pattern.permute.xlu0 0
  %51 = vperm.xlu0 %50, %v41
  %v52 = vpop.permute.xlu0 %51
  %55 = vset.pattern.permute.xlu0 0
  %56 = vperm.xlu0 %55, %v42
  %v57 = vpop.permute.xlu0 %56
  %60 = vset.pattern.permute.xlu0 0
  %61 = vperm.xlu0 %60, %v43
  %v62 = vpop.permute.xlu0 %61
  %vm64 = vcmask 130048
  %v66 = vsel %vm64, %v36, 0
  %v69 = vsel %vm64, %v37, 0
  %v72 = vsel %vm64, %v38, 0
  %v75 = vsel %vm64, %v39, 0
  %v78 = vsel %vm64, %v20, 0
  %v81 = vsel %vm64, %v21, 0
  %v84 = vsel %vm64, %v22, 0
  %v87 = vsel %vm64, %v23, 0
  %v90 = vsel %vm64, %v24, 0
  %v93 = vsel %vm64, %v25, 0
  %v96 = vsel %vm64, %v26, 0
  %v99 = vsel %vm64, %v27, 0
  %v102 = vsel %vm64, %v28, 0
  %v105 = vsel %vm64, %v29, 0
  %v108 = vsel %vm64, %v30, 0
  %v111 = vsel %vm64, %v31, 0
  %v114 = vsel %vm64, %v32, 0
  %v117 = vsel %vm64, %v33, 0
  %v120 = vsel %vm64, %v34, 0
  %v123 = vsel %vm64, %v35, 0
  %125 = vmatprep.subr.mxu0 0.0
  %126 = vmatpush1.xpose.msra.mxu0 %v78
  %127 = vmatprep.subr.mxu0 0.0
  %128 = vmatpush1.xpose.msra.mxu0 %v81
  %129 = vmatprep.subr.mxu0 0.0
  %130 = vmatpush1.xpose.msra.mxu0 %v84
  %131 = vmatprep.subr.mxu0 0.0
  %132 = vmatpush1.xpose.msra.mxu0 %v87
  %133 = vmatprep.subr.mxu0 0.0
  %134 = vmatpush1.xpose.msra.mxu0 %v90
  %135 = vmatprep.subr.mxu0 0.0
  %136 = vmatpush1.xpose.msra.mxu0 %v93
  %137 = vmatprep.subr.mxu0 0.0
  %138 = vmatpush1.xpose.msra.mxu0 %v96
  %139 = vmatprep.subr.mxu0 0.0
  %140 = vmatpush1.xpose.msra.mxu0 %v99
  %141 = vmatprep.subr.mxu0 0.0
  %142 = vmatpush1.xpose.msra.mxu0 %v102
  %143 = vmatprep.subr.mxu0 0.0
  %144 = vmatpush1.xpose.msra.mxu0 %v105
  %145 = vmatprep.subr.mxu0 0.0
  %146 = vmatpush1.xpose.msra.mxu0 %v108
  %147 = vmatprep.subr.mxu0 0.0
  %148 = vmatpush1.xpose.msra.mxu0 %v111
  %149 = vmatprep.subr.mxu0 0.0
  %150 = vmatpush1.xpose.msra.mxu0 %v114
  %151 = vmatprep.subr.mxu0 0.0
  %152 = vmatpush1.xpose.msra.mxu0 %v117
  %153 = vmatprep.subr.mxu0 0.0
  %154 = vmatpush1.xpose.msra.mxu0 %v120
  %155 = vmatprep.subr.mxu0 0.0
  %156 = vmatpush1.xpose.msra.mxu0 %v123
  %157 = vmatprep.subr.mxu0 0.0
  %158 = vmatpush1.xpose.msra.mxu0 0.0
  %159 = vmatprep.subr.mxu0 0.0
  %160 = vmatpush1.xpose.msra.mxu0 0.0
  %161 = vmatprep.subr.mxu0 0.0
  %162 = vmatpush1.xpose.msra.mxu0 0.0
  %163 = vmatprep.subr.mxu0 0.0
  %164 = vmatpush1.xpose.msra.mxu0 0.0
  %165 = vmatprep.subr.mxu0 0.0
  %166 = vmatpush1.xpose.msra.mxu0 0.0
  %167 = vmatprep.subr.mxu0 0.0
  %168 = vmatpush1.xpose.msra.mxu0 0.0
  %169 = vmatprep.subr.mxu0 0.0
  %170 = vmatpush1.xpose.msra.mxu0 0.0
  %171 = vmatprep.subr.mxu0 0.0
  %172 = vmatpush1.xpose.msra.mxu0 0.0
  %173 = vmatprep.subr.mxu0 0.0
  %174 = vmatpush1.xpose.msra.mxu0 0.0
  %175 = vmatprep.subr.mxu0 0.0
  %176 = vmatpush1.xpose.msra.mxu0 0.0
  %177 = vmatprep.subr.mxu0 0.0
  %178 = vmatpush1.xpose.msra.mxu0 0.0
  %179 = vmatprep.subr.mxu0 0.0
  %180 = vmatpush1.xpose.msra.mxu0 0.0
  %181 = vmatprep.subr.mxu0 0.0
  %182 = vmatpush1.xpose.msra.mxu0 0.0
  %183 = vmatprep.subr.mxu0 0.0
  %184 = vmatpush1.xpose.msra.mxu0 0.0
  %185 = vmatprep.subr.mxu0 0.0
  %186 = vmatpush1.xpose.msra.mxu0 0.0
  %187 = vmatprep.subr.mxu0 0.0
  %188 = vmatpush1.xpose.msra.mxu0 0.0
  %189 = vmatprep.mubr.f32.mxu0 0.0
  %190 = vmatmul.mubr.f32.gmra.mrb[0].mxu0 %v66
  %v191 = vpop.f32.mrb[0].mxu0
  %v192 = vadd.f32 %v47, %v191
  %v193 = vpop.f32.mrb[0].mxu0
  %194 = vmatprep.mubr.f32.mxu0 0.0
  %195 = vmatmul.mubr.f32.gmra.mrb[0].mxu0 %v69
  %v196 = vpop.f32.mrb[0].mxu0
  %v197 = vadd.f32 %v52, %v196
  %v198 = vpop.f32.mrb[0].mxu0
  %199 = vmatprep.mubr.f32.mxu0 0.0
  %200 = vmatmul.mubr.f32.gmra.mrb[0].mxu0 %v72
  %v201 = vpop.f32.mrb[0].mxu0
  %v202 = vadd.f32 %v57, %v201
  %v203 = vpop.f32.mrb[0].mxu0
  %204 = vmatprep.mubr.f32.mxu0 0.0
  %205 = vmatmul.mubr.f32.gmra.mrb[0].mxu0 %v75
  %v206 = vpop.f32.mrb[0].mxu0
  %v207 = vadd.f32 %v62, %v206
  %v208 = vpop.f32.mrb[0].mxu0
  %209 = vdwg.mxu0
  %v210 = vmax.f32 %v192, 0.0
  %v211 = vmax.f32 %v197, 0.0
  %v212 = vmax.f32 %v202, 0.0
  %v213 = vmax.f32 %v207, 0.0
  %v214 = vld [vmem:[%s3] sm:$0xff]
  %v215 = vld [vmem:[%s4] sm:$0xff]
  %217 = vset.pattern.permute.xlu0 0
  %218 = vperm.xlu0 %217, %v215
  %v219 = vpop.permute.xlu0 %218
  %vm221 = vcmask 261120
  %v223 = vsel %vm221, %v214, 0
  %225 = vmatprep.subr.mxu0 0.0
  %226 = vmatpush1.msra.mxu0 %v210
  %227 = vmatprep.subr.mxu0 0.0
  %228 = vmatpush1.msra.mxu0 %v211
  %229 = vmatprep.subr.mxu0 0.0
  %230 = vmatpush1.msra.mxu0 %v212
  %231 = vmatprep.subr.mxu0 0.0
  %232 = vmatpush1.msra.mxu0 %v213
  %233 = vmatprep.subr.mxu0 0.0
  %234 = vmatpush1.msra.mxu0 0.0
  %235 = vmatprep.subr.mxu0 0.0
  %236 = vmatpush1.msra.mxu0 0.0
  %237 = vmatprep.subr.mxu0 0.0
  %238 = vmatpush1.msra.mxu0 0.0
  %239 = vmatprep.subr.mxu0 0.0
  %240 = vmatpush1.msra.mxu0 0.0
  %241 = vmatprep.subr.mxu0 0.0
  %242 = vmatpush1.msra.mxu0 0.0
  %243 = vmatprep.subr.mxu0 0.0
  %244 = vmatpush1.msra.mxu0 0.0
  %245 = vmatprep.subr.mxu0 0.0
  %246 = vmatpush1.msra.mxu0 0.0
  %247 = vmatprep.subr.mxu0 0.0
  %248 = vmatpush1.msra.mxu0 0.0
  %249 = vmatprep.subr.mxu0 0.0
  %250 = vmatpush1.msra.mxu0 0.0
  %251 = vmatprep.subr.mxu0 0.0
  %252 = vmatpush1.msra.mxu0 0.0
  %253 = vmatprep.subr.mxu0 0.0
  %254 = vmatpush1.msra.mxu0 0.0
  %255 = vmatprep.subr.mxu0 0.0
  %256 = vmatpush1.msra.mxu0 0.0
  %257 = vmatprep.subr.mxu0 0.0
  %258 = vmatpush1.msra.mxu0 0.0
  %259 = vmatprep.subr.mxu0 0.0
  %260 = vmatpush1.msra.mxu0 0.0
  %261 = vmatprep.subr.mxu0 0.0
  %262 = vmatpush1.msra.mxu0 0.0
  %263 = vmatprep.subr.mxu0 0.0
  %264 = vmatpush1.msra.mxu0 0.0
  %265 = vmatprep.subr.mxu0 0.0
  %266 = vmatpush1.msra.mxu0 0.0
  %267 = vmatprep.subr.mxu0 0.0
  %268 = vmatpush1.msra.mxu0 0.0
  %269 = vmatprep.subr.mxu0 0.0
  %270 = vmatpush1.msra.mxu0 0.0
  %271 = vmatprep.subr.mxu0 0.0
  %272 = vmatpush1.msra.mxu0 0.0
  %273 = vmatprep.subr.mxu0 0.0
  %274 = vmatpush1.msra.mxu0 0.0
  %275 = vmatprep.subr.mxu0 0.0
  %276 = vmatpush1.msra.mxu0 0.0
  %277 = vmatprep.subr.mxu0 0.0
  %278 = vmatpush1.msra.mxu0 0.0
  %279 = vmatprep.subr.mxu0 0.0
  %280 = vmatpush1.msra.mxu0 0.0
  %281 = vmatprep.subr.mxu0 0.0
  %282 = vmatpush1.msra.mxu0 0.0
  %283 = vmatprep.subr.mxu0 0.0
  %284 = vmatpush1.msra.mxu0 0.0
  %285 = vmatprep.subr.mxu0 0.0
  %286 = vmatpush1.msra.mxu0 0.0
  %287 = vmatprep.subr.mxu0 0.0
  %288 = vmatpush1.msra.mxu0 0.0
  %289 = vmatprep.mubr.f32.mxu0 0.0
  %290 = vmatmul.mubr.f32.gmra.mrb[0].mxu0 %v223
  %v291 = vpop.f32.mrb[0].mxu0
  %v292 = vadd.f32 %v219, %v291
  %v293 = vpop.f32.mrb[0].mxu0
  %294 = vdwg.mxu0
  %v295 = vlaneseq
  %v296 = vshrl.u32 %v295, 7
  %v297 = vtanh.pop %v292
  %v298 = vmul.f32 %v297, 2.0
  %v299 = vmax.f32 %v292, 0.0
  %v300 = vand.u32 2147483647, %v292
  %v301 = vsub.f32 0.0, %v300
  %v302 = vmul.f32 %v301, 1.442695
  %v303 = vpow.pop %v302
  %v304 = vadd.f32 %v303, 1.0
  %v305 = vlog2.pop %v304
  %v306 = vmul.f32 %v305, 0.6931472
  %v307 = vmul.f32 -0.5, %v303
  %v308 = vadd.f32 %v307, 1.0
  %v309 = vmul.f32 %v308, %v303
  %v310 = vand.u32 2147483647, %v303
  %vm311 = vcmp.lt.f32.partialorder %v310, 0.0004427343
  %v312 = vsel %vm311, %v309, %v306
  %v313 = vadd.f32 %v299, %v312
  %vm314 = vcmp.lt.s32.totalorder %v296, 4
  %v315 = vsel %vm314, %v298, %v313
  %316 = vst [vmem:[%s5] sm:$0xff] %v315
  // Predicated region
  $region22: #{tpu_custom_call.1} parent=0 // pred_check
    _
  $region23: #{tpu_custom_call.1} parent=0 // pred_check_branch
    %318 = sbr.rel (0) target = $region25
  $region24: #{tpu_custom_call.1} parent=0 // pred_region
    _
  $region25: #{tpu_custom_call.1} parent=0 // pred_fallthru
    _
  // Predicated region
  $region26: #{tpu_custom_call.1} parent=0 // pred_check
    _
  $region27: #{tpu_custom_call.1} parent=0 // pred_check_branch
    %320 = sbr.rel (0) target = $region29
  $region28: #{tpu_custom_call.1} parent=0 // pred_region
    _
  $region29: #{tpu_custom_call.1} parent=0 // pred_fallthru
    _

</llo_original>
